<compile_context>
chip_gen: v5e
topology: v5e:2x2
jax: 0.10.0
libtpu: 0.0.40
codegen_flags: <defaults>
</compile_context>

<pallas_src>
import functools

import jax
import jax.numpy as jnp
import numpy as np
from jax import lax
from jax.experimental import pallas as pl
from jax.experimental.pallas import tpu as pltpu


def _round_up(x, mult):
    return ((x + mult - 1) // mult) * mult


# -----------------------------------------------------------------------------
# Kernel: one (batch, frame-tile) grid step of the overlap-add synthesis
# -----------------------------------------------------------------------------
def _decoder_kernel(spec_ref, halo_ref, filt_ref, out_ref, *scratch,
                    S, taps, tile, stage, n_frames, compute_dtype):
    """spec_ref: (N, tile)   halo_ref: (N, stage)   filt_ref: (K, N)
    out_ref:  (S, tile)     scratch: optional (K - S, stage + tile) f32.

    Output slot j of this tile holds samples wav[(c*tile + j)*S : (c*tile + j + 1)*S].
    """
    c = pl.program_id(1)
    frame0 = c * tile
    ovl = taps - 1

    filt = filt_ref[...]                                     # (K, N), compute dtype
    spec = spec_ref[...].astype(compute_dtype)               # cast on VPU (free, mem-bound)

    # Projection onto the decoder filters, frames on lanes: (K,N) x (N,tile) -> (K,tile)
    contrib = lax.dot_general(
        filt, spec,
        dimension_numbers=(((1,), (0,)), ((), ())),
        preferred_element_type=jnp.float32)

    # Zero columns whose frame index is past the end of the spectrogram: the last
    # (ragged) tile's DMA'd block may contain garbage there (no wrapper padding).
    lane = lax.broadcasted_iota(jnp.int32, (1, tile), 1)
    contrib = jnp.where(frame0 + lane < n_frames, contrib, 0.0)

    head = contrib[0:S, :]                                   # tap 0, straight from the value

    if ovl > 0:
        ctr_ref = scratch[0]                                 # (K - S, stage + tile) f32
        # Halo: recompute the (taps-1) frames preceding this tile from the 128-aligned
        # halo block (only filter rows >= S are ever read back through the overlap-add).
        halo_spec = halo_ref[:, pl.ds(stage - ovl, ovl)].astype(compute_dtype)   # (N, ovl)
        halo = lax.dot_general(
            filt[S:, :], halo_spec,
            dimension_numbers=(((1,), (0,)), ((), ())),
            preferred_element_type=jnp.float32)              # (K - S, ovl)
        hq = lax.broadcasted_iota(jnp.int32, (1, ovl), 1)
        hframe = frame0 - ovl + hq
        halo = jnp.where((hframe >= 0) & (hframe < n_frames), halo, 0.0)

        # Stage rows [S:K) at a 128-aligned lane offset (wide store stays unmasked);
        # the halo fills the ovl columns just left of it so every shifted read below
        # is a single static slice and everything stays lane-dense over the tile axis.
        ctr_ref[:, pl.ds(stage - ovl, ovl)] = halo
        ctr_ref[:, pl.ds(stage, tile)] = contrib[S:, :]

        # Overlap-add: tap i contributes contrib[i*S:(i+1)*S, j - i] to slot j.
        for i in range(1, taps):
            head = head + ctr_ref[pl.ds((i - 1) * S, S), pl.ds(stage - i, tile)]

    out_ref[...] = head.astype(out_ref.dtype)


# -----------------------------------------------------------------------------
# Frame-tile auto sizing: budget everything resident in VMEM per grid step.
# -----------------------------------------------------------------------------
def _auto_frame_tile(N, K, S, taps, spec_bpe, filt_bpe, total_slots, stage,
                     budget_bytes=24 * 1024 * 1024, max_tile=16384):
    fixed = 2 * N * stage * spec_bpe + 2 * K * N * filt_bpe      # halo + filter blocks
    per_col = 2 * N * spec_bpe + 2 * S * 4                        # spec + out double buffers
    if taps > 1:
        fixed += (K - S) * stage * 4                              # scratch staging columns
        per_col += (K - S) * 4                                    # scratch tile columns
    avail = max(budget_bytes - fixed, 0)
    cap = (avail // max(per_col, 1)) // stage * stage
    cap = max(stage, min(cap, max_tile))
    return max(stage, min(cap, _round_up(total_slots, stage)))


# -----------------------------------------------------------------------------
# Wrapper: conv_transpose1d over a (n_filters, kernel_size) filterbank
# -----------------------------------------------------------------------------
def _conv_transpose1d_pallas(spec, filters, stride, *, compute_dtype=jnp.bfloat16,
                             frame_tile=None):
    """spec: (B, N, T), filters: (N, K)  ->  (B, 1, (T-1)*stride + K) float32."""
    B, N, T = spec.shape
    K = filters.shape[-1]
    assert filters.shape[0] == N
    S = int(stride)
    # TODO(synk): general kernel_size % stride != 0 path (needs per-phase lane offsets);
    # typical free filterbanks use stride == kernel_size // 2.
    assert K % S == 0, "kernel assumes kernel_size % stride == 0"
    taps = K // S
    ovl = taps - 1
    L = (T - 1) * S + K

    # Halo width / staging lane offset: multiple of 128 so wide accesses are aligned.
    stage = _round_up(max(ovl, 1), 128)
    total_slots = T + ovl

    spec_bpe = np.dtype(spec.dtype).itemsize
    filt_bpe = np.dtype(compute_dtype).itemsize
    if frame_tile is None:
        tile = _auto_frame_tile(N, K, S, taps, spec_bpe, filt_bpe, total_slots, stage)
    else:
        tile = _round_up(max(int(frame_tile), stage), stage)
    n_tiles = -(-total_slots // tile)
    t_pad = n_tiles * tile
    n_spec_blocks = max(1, -(-T // tile))
    halo_blocks_per_tile = tile // stage

    # Small: only the (K, N) filterbank is prepared in the wrapper.
    filt_c = jnp.transpose(filters, (1, 0)).astype(compute_dtype)

    kernel = functools.partial(
        _decoder_kernel, S=S, taps=taps, tile=tile, stage=stage,
        n_frames=T, compute_dtype=compute_dtype)

    scratch_shapes = (
        [pltpu.VMEM((K - S, stage + tile), jnp.float32)] if taps > 1 else [])

    out = pl.pallas_call(
        kernel,
        out_shape=jax.ShapeDtypeStruct((B, S, t_pad), jnp.float32),
        grid_spec=pltpu.PrefetchScalarGridSpec(
            num_scalar_prefetch=0,
            grid=(B, n_tiles),
            in_specs=[
                # Main frame tile. Clamped so the block never starts fully out of
                # bounds; the kernel masks columns past the end of the spectrogram.
                pl.BlockSpec((None, N, tile),
                             lambda b, c: (b, 0, jnp.minimum(c, n_spec_blocks - 1))),
                # 128-aligned halo block ending at this tile's first frame
                # (clamped to block 0 for the first tile; masked in-kernel).
                pl.BlockSpec((None, N, stage),
                             lambda b, c: (b, 0, jnp.maximum(c * halo_blocks_per_tile - 1, 0))),
                # Filterbank: constant block index -> fetched once, not per step.
                pl.BlockSpec((K, N), lambda b, c: (0, 0)),
            ],
            out_specs=pl.BlockSpec((None, S, tile), lambda b, c: (b, 0, c)),
            scratch_shapes=scratch_shapes,
        ),
        compiler_params=pltpu.CompilerParams(
            # Halo recompute makes frame tiles independent -> both axes parallel
            # (keeps both v7x TensorCores busy even for batch == 1).
            dimension_semantics=("parallel", "parallel"),
            vmem_limit_bytes=48 * 1024 * 1024,
        ),
    )(spec, spec, filt_c)

    # Interleave slots: wav[b, 0, j*S + s] = out[b, s, j].  Done in XLA on the
    # (small) waveform so every in-kernel store stays lane-dense / unmasked.
    wav = jnp.transpose(out, (0, 2, 1)).reshape(B, 1, t_pad * S)
    return wav[:, :, :L]


# -----------------------------------------------------------------------------
# Decoder module (free filterbank), mirroring the PyTorch forward semantics
# -----------------------------------------------------------------------------
class PallasDecoder:
    """Decoder over a 'free' (learned) filterbank: filters (n_filters, 1, kernel_size)."""

    def __init__(self, n_filters, kernel_size, stride=None, is_pinv=False,
                 padding=0, output_padding=0, compute_dtype=jnp.bfloat16,
                 frame_tile=None, key=None):
        self.n_filters = n_filters
        self.kernel_size = kernel_size
        self.stride = stride if stride else kernel_size // 2
        self.is_pinv = is_pinv
        self.padding = padding
        self.output_padding = output_padding
        self.compute_dtype = compute_dtype
        self.frame_tile = frame_tile
        key = jax.random.PRNGKey(0) if key is None else key
        # FreeFB-style learned filters: (n_filters, 1, kernel_size)
        self._filters = jax.random.normal(
            key, (n_filters, 1, kernel_size), dtype=jnp.float32)

    def get_filters(self):
        if self.is_pinv:
            scale = self.stride / self.kernel_size
            f = self._filters[:, 0, :]                      # (N, K)
            ifilt = jnp.linalg.pinv(f).T                    # (N, K)
            return (ifilt * scale).reshape(self._filters.shape)
        return self._filters

    def __call__(self, spec, length=None):
        filters = self.get_filters()[:, 0, :]               # (N, K)

        orig_shape = spec.shape
        if spec.ndim == 2:                                   # (N, T) -> batch of 1
            spec3 = spec[None]
        elif spec.ndim == 3:                                 # (B, N, T)
            spec3 = spec
        else:                                                # (..., N, T)
            spec3 = spec.reshape((-1,) + spec.shape[-2:])

        wav = _conv_transpose1d_pallas(
            spec3, filters, self.stride,
            compute_dtype=self.compute_dtype, frame_tile=self.frame_tile)

        # conv_transpose1d cropping: out = full[p : p + L_out], zero-extended on the
        # right when output_padding pushes past the natural support.
        L_full = wav.shape[-1]
        L_out = L_full - 2 * self.padding + self.output_padding
        end = self.padding + L_out
        if end > L_full:
            wav = jnp.concatenate(
                [wav, jnp.zeros(wav.shape[:-1] + (end - L_full,), wav.dtype)], axis=-1)
        wav = wav[..., self.padding:end]

        if spec.ndim == 2:
            wav = wav[0, 0]                                  # (time,)
        elif spec.ndim == 3:
            pass                                             # (B, 1, time)
        else:
            wav = wav.reshape(orig_shape[:-2] + (-1,))       # (..., time)

        if length is not None:
            length = min(length, wav.shape[-1])
            wav = wav[..., :length]
        return wav


# -----------------------------------------------------------------------------
# Pure-numpy reference (direct per-frame scatter-add conv_transpose1d, float64)
# -----------------------------------------------------------------------------
def _ref_conv_transpose1d(spec, w2d, stride):
    spec = np.asarray(spec, np.float64)
    w = np.asarray(w2d, np.float64)
    B, N, T = spec.shape
    K = w.shape[-1]
    L = (T - 1) * stride + K
    contrib = np.einsum("bnt,nk->btk", spec, w)
    out = np.zeros((B, 1, L), np.float64)
    for f in range(T):
        out[:, 0, f * stride:f * stride + K] += contrib[:, f, :]
    return out


if __name__ == "__main__":
    key = jax.random.PRNGKey(0)
    k_filt, k_spec = jax.random.split(key)

    n_filters, kernel_size, stride = 256, 16, 8
    B, T = 2, 200
    spec = jax.random.normal(k_spec, (B, n_filters, T), dtype=jnp.float32)
    L = (T - 1) * stride + kernel_size

    # frame_tile=128 forces multiple frame tiles so the halo path runs.
    dec_small = PallasDecoder(n_filters, kernel_size, stride=stride,
                              frame_tile=128, key=k_filt)

    # Reference on bf16-quantized inputs (products are then exact; only
    # accumulation order / precision differs from the kernel).
    w2d = dec_small.get_filters()[:, 0, :]
    spec_q = np.asarray(spec.astype(jnp.bfloat16).astype(jnp.float32))
    w_q = np.asarray(w2d.astype(jnp.bfloat16).astype(jnp.float32))
    ref = _ref_conv_transpose1d(spec_q, w_q, stride)

    wav = jax.block_until_ready(dec_small(spec))
    assert wav.shape == (B, 1, L), wav.shape
    np.testing.assert_allclose(np.asarray(wav), ref, rtol=5e-3, atol=5e-3)

    # Default (auto) frame tile -> single ragged tile, in-kernel end masking.
    dec_auto = PallasDecoder(n_filters, kernel_size, stride=stride, key=k_filt)
    wav2 = jax.block_until_ready(dec_auto(spec))
    assert wav2.shape == (B, 1, L), wav2.shape
    np.testing.assert_allclose(np.asarray(wav2), ref, rtol=5e-3, atol=5e-3)

    print("KERNEL_OK")
</pallas_src>

<mosaic_0001>
module attributes {stable_mosaic.version = 11 : i64} {
  func.func @_decoder_kernel(%arg0: i32, %arg1: i32, %arg2: memref<1x256x128xf32, #tpu.memory_space<vmem>>, %arg3: memref<1x256x128xf32, #tpu.memory_space<vmem>>, %arg4: memref<16x256xbf16, #tpu.memory_space<vmem>>, %arg5: memref<1x8x128xf32, #tpu.memory_space<vmem>>, %arg6: memref<8x256xf32, #tpu.memory_space<vmem>>) attributes {dimension_semantics = [#tpu.dimension_semantics<parallel>, #tpu.dimension_semantics<parallel>], iteration_bounds = array<i64: 2, 2>, scalar_prefetch = 0 : i64, scratch_operands = 1 : i64, tpu.core_type = #tpu.core_type<tc>, window_params = [{transform_indices = @transform_0, window_bounds = array<i64: 1, 256, 128>}, {transform_indices = @transform_1, window_bounds = array<i64: 1, 256, 128>}, {pipeline_mode = #tpu.pipeline_mode<synchronous>, transform_indices = @transform_2, window_bounds = array<i64: 16, 256>}, {transform_indices = @transform_3, window_bounds = array<i64: 1, 8, 128>}]} {
    %c128_i32 = arith.constant 128 : i32
    %0 = arith.muli %arg1, %c128_i32 : i32
    %c0 = arith.constant 0 : index
    %c0_0 = arith.constant 0 : index
    %1 = vector.load %arg4[%c0, %c0_0] : memref<16x256xbf16, #tpu.memory_space<vmem>>, vector<16x256xbf16>
    %c0_1 = arith.constant 0 : index
    %c0_2 = arith.constant 0 : index
    %c0_3 = arith.constant 0 : index
    %2 = vector.load %arg2[%c0_1, %c0_2, %c0_3] : memref<1x256x128xf32, #tpu.memory_space<vmem>>, vector<1x256x128xf32>
    %3 = vector.shape_cast %2 : vector<1x256x128xf32> to vector<256x128xf32>
    %4 = arith.truncf %3 : vector<256x128xf32> to vector<256x128xbf16>
    %cst = arith.constant dense<0.000000e+00> : vector<16x128xf32>
    %5 = tpu.matmul %1, %4, %cst {dimension_numbers = #tpu.dot_dimension_numbers<[1], [0], [0], [1], [0, 0, 1, 1], [], []>} : vector<16x256xbf16>, vector<256x128xbf16>, vector<16x128xf32> -> vector<16x128xf32>
    %6 = tpu.iota {dimensions = array<i32: 1>} : vector<1x128xi32>
    %7 = vector.broadcast %0 : i32 to vector<1x128xi32>
    %8 = arith.addi %7, %6 : vector<1x128xi32>
    %c200_i32 = arith.constant 200 : i32
    %9 = vector.broadcast %c200_i32 : i32 to vector<1x128xi32>
    %10 = arith.cmpi slt, %8, %9 : vector<1x128xi32>
    %cst_4 = arith.constant 0.000000e+00 : f32
    %11 = vector.shape_cast %10 : vector<1x128xi1> to vector<1x128xi1>
    %12 = vector.broadcast %11 : vector<1x128xi1> to vector<16x128xi1>
    %13 = vector.broadcast %cst_4 : f32 to vector<16x128xf32>
    %14 = arith.select %12, %5, %13 : vector<16x128xi1>, vector<16x128xf32>
    %15 = vector.extract_strided_slice %14 {offsets = [0, 0], sizes = [8, 128], strides = [1, 1]} : vector<16x128xf32> to vector<8x128xf32>
    %c0_5 = arith.constant 0 : index
    %c0_6 = arith.constant 0 : index
    %c127 = arith.constant 127 : index
    %16 = vector.load %arg3[%c0_5, %c0_6, %c127] : memref<1x256x128xf32, #tpu.memory_space<vmem>>, vector<1x256x1xf32>
    %17 = vector.shape_cast %16 : vector<1x256x1xf32> to vector<256x1xf32>
    %18 = arith.truncf %17 : vector<256x1xf32> to vector<256x1xbf16>
    %19 = vector.extract_strided_slice %1 {offsets = [8, 0], sizes = [8, 256], strides = [1, 1]} : vector<16x256xbf16> to vector<8x256xbf16>
    %cst_7 = arith.constant dense<0.000000e+00> : vector<8x1xf32>
    %20 = tpu.matmul %19, %18, %cst_7 {dimension_numbers = #tpu.dot_dimension_numbers<[1], [0], [0], [1], [0, 0, 1, 1], [], []>} : vector<8x256xbf16>, vector<256x1xbf16>, vector<8x1xf32> -> vector<8x1xf32>
    %21 = tpu.iota {dimensions = array<i32: 1>} : vector<1x1xi32>
    %c1_i32 = arith.constant 1 : i32
    %22 = arith.subi %0, %c1_i32 : i32
    %23 = vector.broadcast %22 : i32 to vector<1x1xi32>
    %24 = arith.addi %23, %21 : vector<1x1xi32>
    %c0_i32 = arith.constant 0 : i32
    %25 = vector.broadcast %c0_i32 : i32 to vector<1x1xi32>
    %26 = arith.cmpi sge, %24, %25 : vector<1x1xi32>
    %c200_i32_8 = arith.constant 200 : i32
    %27 = vector.broadcast %c200_i32_8 : i32 to vector<1x1xi32>
    %28 = arith.cmpi slt, %24, %27 : vector<1x1xi32>
    %29 = arith.andi %26, %28 : vector<1x1xi1>
    %cst_9 = arith.constant 0.000000e+00 : f32
    %30 = vector.shape_cast %29 : vector<1x1xi1> to vector<1x1xi1>
    %31 = vector.broadcast %30 : vector<1x1xi1> to vector<8x1xi1>
    %32 = vector.broadcast %cst_9 : f32 to vector<8x1xf32>
    %33 = arith.select %31, %20, %32 : vector<8x1xi1>, vector<8x1xf32>
    %c0_10 = arith.constant 0 : index
    %c127_11 = arith.constant 127 : index
    %34 = vector.load %arg6[%c0_10, %c127_11] : memref<8x256xf32, #tpu.memory_space<vmem>>, vector<8x1xf32>
    tpu.vector_store %arg6[%c0_10, %c127_11], %33 {strides = array<i32>} : memref<8x256xf32, #tpu.memory_space<vmem>>, vector<8x1xf32>,
    %35 = vector.extract_strided_slice %14 {offsets = [8, 0], sizes = [8, 128], strides = [1, 1]} : vector<16x128xf32> to vector<8x128xf32>
    %c0_12 = arith.constant 0 : index
    %c128 = arith.constant 128 : index
    %36 = vector.load %arg6[%c0_12, %c128] : memref<8x256xf32, #tpu.memory_space<vmem>>, vector<8x128xf32>
    tpu.vector_store %arg6[%c0_12, %c128], %35 {strides = array<i32>} : memref<8x256xf32, #tpu.memory_space<vmem>>, vector<8x128xf32>,
    %c0_13 = arith.constant 0 : index
    %c127_14 = arith.constant 127 : index
    %37 = vector.load %arg6[%c0_13, %c127_14] : memref<8x256xf32, #tpu.memory_space<vmem>>, vector<8x128xf32>
    %38 = arith.addf %15, %37 : vector<8x128xf32>
    %c0_15 = arith.constant 0 : index
    %c0_16 = arith.constant 0 : index
    %c0_17 = arith.constant 0 : index
    %39 = vector.load %arg5[%c0_15, %c0_16, %c0_17] : memref<1x8x128xf32, #tpu.memory_space<vmem>>, vector<1x8x128xf32>
    %40 = vector.shape_cast %39 : vector<1x8x128xf32> to vector<8x128xf32>
    %41 = vector.shape_cast %38 : vector<8x128xf32> to vector<1x8x128xf32>
    tpu.vector_store %arg5[%c0_15, %c0_16, %c0_17], %41 {strides = array<i32>} : memref<1x8x128xf32, #tpu.memory_space<vmem>>, vector<1x8x128xf32>,
    return
  }
  func.func @transform_0(%arg0: i32, %arg1: i32) -> (i32, i32, i32) {
    %c1_i32 = arith.constant 1 : i32
    %0 = arith.minsi %arg1, %c1_i32 : i32
    %c0_i32 = arith.constant 0 : i32
    %c0_i32_0 = arith.constant 0 : i32
    return %arg0, %c0_i32, %0 : i32, i32, i32
  }
  func.func @transform_1(%arg0: i32, %arg1: i32) -> (i32, i32, i32) {
    %c1_i32 = arith.constant 1 : i32
    %0 = arith.muli %arg1, %c1_i32 : i32
    %c1_i32_0 = arith.constant 1 : i32
    %1 = arith.subi %0, %c1_i32_0 : i32
    %c0_i32 = arith.constant 0 : i32
    %2 = arith.maxsi %1, %c0_i32 : i32
    %c0_i32_1 = arith.constant 0 : i32
    %c0_i32_2 = arith.constant 0 : i32
    return %arg0, %c0_i32_1, %2 : i32, i32, i32
  }
  func.func @transform_2(%arg0: i32, %arg1: i32) -> (i32, i32) {
    %c0_i32 = arith.constant 0 : i32
    %c0_i32_0 = arith.constant 0 : i32
    %c0_i32_1 = arith.constant 0 : i32
    return %c0_i32, %c0_i32_0 : i32, i32
  }
  func.func @transform_3(%arg0: i32, %arg1: i32) -> (i32, i32, i32) {
    %c0_i32 = arith.constant 0 : i32
    %c0_i32_0 = arith.constant 0 : i32
    return %arg0, %c0_i32, %arg1 : i32, i32, i32
  }
}

</mosaic_0001>

<llo_original>
// kernel: tpu_custom_call.1
$region0: #{tpu_custom_call.1}
  #allocation0 [shape = 'u32[]', space=smem, size = 0x4, offset = 0x4, fixed_abs, tag = 'smem constant byte address 0x4 - core index']
  #allocation1 [shape = 'u32[72,128]{1,0:T(1,128)}', space=vmem, size = 0x9000, scoped, tag = 'internal scratch']
  #allocation2 [shape = 'f32[8,256]{1,0:T(8,128)}', space=vmem, size = 0x2000, scoped, tag = 'scratch operand']
  %s0 = inlined_call_operand.vmem [shape: f32[2,256,200], index: 0, kind: input, shape index: {}]
  %s1 = inlined_call_operand.vmem [shape: f32[2,256,200], index: 1, kind: input, shape index: {}]
  %s2 = inlined_call_operand.vmem [shape: bf16[16,256], index: 2, kind: input, shape index: {}]
  %s3 = inlined_call_operand.hbm [shape: f32[2,8,256], index: 3, kind: output, shape index: {}]
  %s4 = sld [smem:[#allocation0]]
  $region121: #{tpu_custom_call.1} parent=0
    _
  %s6 = ssub.s32 1, %s4
  %s7 = scalar_select 0, %s6, %s4
  $region1: #{tpu_custom_call.1} parent=0
    #allocation3 [shape = 'u8[262144]{0}', space=vmem, size = 0x40000, scoped, tag = 'input window, operand 0']
    #allocation4 [shape = 'u8[262144]{0}', space=vmem, size = 0x40000, scoped, tag = 'input window, operand 1']
    #allocation5 [shape = 'u8[8192]{0}', space=vmem, size = 0x2000, scoped, tag = 'output window, operand 0']
    #allocation6 [shape = 's32[2]{0}', space=sflag, size = 0x8, scoped, tag = 'scoped memory for tpu_custom_call.1']
    %8 = vsyncpa [#allocation6], 0
    %s9 = scalar_lea.sflag [#allocation6], 1
    %10 = vsyncpa %s9, 0
    loop: start=0, step=1, limit=6
    $region2: #{tpu_custom_call.1} parent=1 // loop_pre_header
      _
    $region3: #{tpu_custom_call.1} parent=1 // loop_header
      %s12 = sphi 0, %s16
      %p13 = scmp.ge.s32.totalorder %s12, 6
      %s19 = sphi 0, %s31
      %s20 = sphi 0, %s27
      %s21 = sphi 0, %s19
      %s22 = sphi 0, %s20
      %s23 = sphi 0, %s21
      %s24 = sphi 0, %s22
      %s40 = sphi 0, %s42
      %s43 = sphi 0, %s40
      %s44 = sphi 0, %s43
      %s60 = sphi 0, %s44
      %s74 = sphi 0, %s76
      %s77 = sphi 0, %s74
      %s78 = sphi 0, %s77
      %s94 = sphi 0, %s78
      %s98 = sphi 0, %s98
      %s100 = sphi 0, %s98
      %s101 = sphi 0, %s100
      %s115 = sphi 0, %s101
      %s123 = sphi 0, %s125
      %s126 = sphi 0, %s123
      %s127 = sphi 0, %s126
      %s143 = sphi 0, %s127
    $region4: #{tpu_custom_call.1} parent=1 // loop_header_branch
      %15 = sbr.rel (%p13) target = $region8
    $region5: #{tpu_custom_call.1} parent=1 // loop_body
      %s17 = ssub.s32 %s12, 1
      %s18 = ssub.s32 %s12, 2
      %s25 = sadd.s32 1, %s20
      %p26 = scmp.ge.s32.totalorder %s25, 2
      %s27 = scalar_select %p26, 0, %s25
      %s28 = sadd.s32 1, %s19
      %s29 = scalar_select %p26, %s28, %s19
      %p30 = scmp.ge.s32.totalorder %s29, 2
      %s31 = scalar_select %p30, 0, %s29
      %p32 = scmp.lt.s32.totalorder %s20, 1
      %s33 = scalar_select %p32, %s20, 1
      %p34 = scmp.lt.s32.totalorder %s27, 1
      %s35 = scalar_select %p34, %s27, 1
      %s36 = ssub.s32 %s19, %s31
      %s37 = ssub.s32 %s33, %s35
      %s38 = sor.u32 %s36, %s37
      %p39 = scmp.eq.s32.totalorder %s38, 0
      %s41 = sadd.s32 %s40, 1
      %s42 = scalar_select %p39, %s40, %s41
      %p45 = pneg %p39
      %p46 = scmp.eq.s32.totalorder %s12, 3
      %p47 = por %p45, %p46
      %p48 = scmp.ne.s32.totalorder %s40, %s43
      %p49 = scmp.eq.s32.totalorder %s12, 0
      %p50 = por %p48, %p49
      %p51 = scmp.ne.s32.totalorder %s40, %s43
      %p52 = scmp.eq.s32.totalorder %s17, 3
      %p53 = por %p51, %p52
      %p54 = scmp.ne.s32.totalorder %s43, %s44
      %p55 = scmp.eq.s32.totalorder %s17, 0
      %p56 = por %p54, %p55
      %p57 = scmp.ne.s32.totalorder %s43, %s44
      %p58 = scmp.eq.s32.totalorder %s18, 3
      %p59 = por %p57, %p58
      %p61 = scmp.ne.s32.totalorder %s44, %s60
      %p62 = scmp.eq.s32.totalorder %s18, 0
      %p63 = por %p61, %p62
      %s64 = ssub.s32 %s20, 1
      %p65 = scmp.gt.s32.totalorder %s64, 0
      %s66 = scalar_select %p65, %s64, 0
      %s67 = ssub.s32 %s27, 1
      %p68 = scmp.gt.s32.totalorder %s67, 0
      %s69 = scalar_select %p68, %s67, 0
      %s70 = ssub.s32 %s19, %s31
      %s71 = ssub.s32 %s66, %s69
      %s72 = sor.u32 %s70, %s71
      %p73 = scmp.eq.s32.totalorder %s72, 0
      %s75 = sadd.s32 %s74, 1
      %s76 = scalar_select %p73, %s74, %s75
      %p79 = pneg %p73
      %p80 = scmp.eq.s32.totalorder %s12, 3
      %p81 = por %p79, %p80
      %p82 = scmp.ne.s32.totalorder %s74, %s77
      %p83 = scmp.eq.s32.totalorder %s12, 0
      %p84 = por %p82, %p83
      %p85 = scmp.ne.s32.totalorder %s74, %s77
      %p86 = scmp.eq.s32.totalorder %s17, 3
      %p87 = por %p85, %p86
      %p88 = scmp.ne.s32.totalorder %s77, %s78
      %p89 = scmp.eq.s32.totalorder %s17, 0
      %p90 = por %p88, %p89
      %p91 = scmp.ne.s32.totalorder %s77, %s78
      %p92 = scmp.eq.s32.totalorder %s18, 3
      %p93 = por %p91, %p92
      %p95 = scmp.ne.s32.totalorder %s78, %s94
      %p96 = scmp.eq.s32.totalorder %s18, 0
      %p97 = por %p95, %p96
      %s99 = sadd.s32 %s98, 1
      %p102 = scmp.eq.s32.totalorder %s12, 3
      %p103 = scmp.ne.s32.totalorder %s98, %s100
      %p104 = scmp.eq.s32.totalorder %s12, 0
      %p105 = por %p103, %p104
      %p106 = scmp.ne.s32.totalorder %s98, %s100
      %p107 = scmp.eq.s32.totalorder %s17, 3
      %p108 = por %p106, %p107
      %p109 = scmp.ne.s32.totalorder %s100, %s101
      %p110 = scmp.eq.s32.totalorder %s17, 0
      %p111 = por %p109, %p110
      %p112 = scmp.ne.s32.totalorder %s100, %s101
      %p113 = scmp.eq.s32.totalorder %s18, 3
      %p114 = por %p112, %p113
      %p116 = scmp.ne.s32.totalorder %s101, %s115
      %p117 = scmp.eq.s32.totalorder %s18, 0
      %p118 = por %p116, %p117
      %s119 = ssub.s32 %s19, %s31
      %s120 = ssub.s32 %s20, %s27
      %s121 = sor.u32 %s119, %s120
      %p122 = scmp.eq.s32.totalorder %s121, 0
      %s124 = sadd.s32 %s123, 1
      %s125 = scalar_select %p122, %s123, %s124
      %p128 = pneg %p122
      %p129 = scmp.eq.s32.totalorder %s12, 3
      %p130 = por %p128, %p129
      %p131 = scmp.ne.s32.totalorder %s123, %s126
      %p132 = scmp.eq.s32.totalorder %s12, 0
      %p133 = por %p131, %p132
      %p134 = scmp.ne.s32.totalorder %s123, %s126
      %p135 = scmp.eq.s32.totalorder %s17, 3
      %p136 = por %p134, %p135
      %p137 = scmp.ne.s32.totalorder %s126, %s127
      %p138 = scmp.eq.s32.totalorder %s17, 0
      %p139 = por %p137, %p138
      %p140 = scmp.ne.s32.totalorder %s126, %s127
      %p141 = scmp.eq.s32.totalorder %s18, 3
      %p142 = por %p140, %p141
      %p144 = scmp.ne.s32.totalorder %s127, %s143
      %p145 = scmp.eq.s32.totalorder %s18, 0
      %p146 = por %p144, %p145
      %p147 = scmp.le.s32.totalorder 1, %s12
      %p148 = scmp.lt.s32.totalorder %s12, 5
      %p149 = pnand %p147, %p148
      %p150 = pneg %p149
      // Predicated region
      $region9: #{tpu_custom_call.1} parent=5 // pred_check
        _
      $region10: #{tpu_custom_call.1} parent=5 // pred_check_branch
        %152 = sbr.rel (%p149) target = $region12
      $region11: #{tpu_custom_call.1} parent=5 // pred_region
        %s153 = ssub.s32 %s12, 1
        // Predicated region
        $region13: #{tpu_custom_call.1} parent=11 // pred_check
          %p154 = pneg %p111
        $region14: #{tpu_custom_call.1} parent=11 // pred_check_branch
          %156 = sbr.rel (%p154) target = $region16
        $region15: #{tpu_custom_call.1} parent=11 // pred_region
          _
        $region16: #{tpu_custom_call.1} parent=11 // pred_fallthru
          _
      $region12: #{tpu_custom_call.1} parent=5 // pred_fallthru
        _
      %p157 = scmp.lt.s32.totalorder %s12, 4
      // Predicated region
      $region17: #{tpu_custom_call.1} parent=5 // pred_check
        %p158 = pneg %p157
      $region18: #{tpu_custom_call.1} parent=5 // pred_check_branch
        %160 = sbr.rel (%p158) target = $region20
      $region19: #{tpu_custom_call.1} parent=5 // pred_region
        // Predicated region
        $region21: #{tpu_custom_call.1} parent=19 // pred_check
          %p161 = pneg %p50
        $region22: #{tpu_custom_call.1} parent=19 // pred_check_branch
          %163 = sbr.rel (%p161) target = $region24
        $region23: #{tpu_custom_call.1} parent=19 // pred_region
          %s164 = sand.u32 %s40, 1
          %s165 = sand.u32 %s40, 1
          %s166 = smul.addr %s165, 256
          %s167 = scalar_lea.vmem [#allocation3], %s166
          %p168 = scmp.lt.s32.totalorder %s20, 1
          %s169 = scalar_select %p168, %s20, 1
          %s170 = smul.addr %s19, 64
          %s171 = sadd.s32 %s169, %s170
          %s172 = smul.addr %s171, 8
          %s173 = scalar_lea.vmem %s0, %s172
          // Predicated region
          $region25: #{tpu_custom_call.1} parent=23 // pred_check
            _
          $region26: #{tpu_custom_call.1} parent=23 // pred_check_branch
            %175 = sbr.rel (0) target = $region28
          $region27: #{tpu_custom_call.1} parent=23 // pred_region
            // Predicated region
            $region29: #{tpu_custom_call.1} parent=27 // pred_check
              _
            $region30: #{tpu_custom_call.1} parent=27 // pred_check_branch
              %177 = sbr.rel (0) target = $region32
            $region31: #{tpu_custom_call.1} parent=27 // pred_region
              // Predicated region
              $region44: #{tpu_custom_call.1} parent=31 // pred_check
                _
              $region45: #{tpu_custom_call.1} parent=31 // pred_check_branch
                %255 = sbr.rel (0) target = $region47
              $region46: #{tpu_custom_call.1} parent=31 // pred_region
                loop: start=0, step=1, limit=1
                $region48: #{tpu_custom_call.1} parent=46 // loop_pre_header
                  _
                $region49: #{tpu_custom_call.1} parent=46 // loop_header
                  %s257 = sphi 0, %s261
                  %p258 = scmp.ge.s32.totalorder %s257, 1
                  %s262 = sphi %s173, %s173
                  %s263 = sphi %s167, %s167
                $region50: #{tpu_custom_call.1} parent=46 // loop_header_branch
                  %260 = sbr.rel (%p258) target = $region54
                $region51: #{tpu_custom_call.1} parent=46 // loop_body
                  %v264 = vld [vmem:[%s262] sm:$0xff]
                  %265 = vst [vmem:[%s263] sm:$0xff] %v264
                  %v266 = vld [vmem:[%s262 + $0x10] sm:$0xff]
                  %267 = vst [vmem:[%s263 + $0x8] sm:$0xff] %v266
                  %v268 = vld [vmem:[%s262 + $0x20] sm:$0xff]
                  %269 = vst [vmem:[%s263 + $0x10] sm:$0xff] %v268
                  %v270 = vld [vmem:[%s262 + $0x30] sm:$0xff]
                  %271 = vst [vmem:[%s263 + $0x18] sm:$0xff] %v270
                  %v272 = vld [vmem:[%s262 + $0x40] sm:$0xff]
                  %273 = vst [vmem:[%s263 + $0x20] sm:$0xff] %v272
                  %v274 = vld [vmem:[%s262 + $0x50] sm:$0xff]
                  %275 = vst [vmem:[%s263 + $0x28] sm:$0xff] %v274
                  %v276 = vld [vmem:[%s262 + $0x60] sm:$0xff]
                  %277 = vst [vmem:[%s263 + $0x30] sm:$0xff] %v276
                  %v278 = vld [vmem:[%s262 + $0x70] sm:$0xff]
                  %279 = vst [vmem:[%s263 + $0x38] sm:$0xff] %v278
                  %v280 = vld [vmem:[%s262 + $0x80] sm:$0xff]
                  %281 = vst [vmem:[%s263 + $0x40] sm:$0xff] %v280
                  %v282 = vld [vmem:[%s262 + $0x90] sm:$0xff]
                  %283 = vst [vmem:[%s263 + $0x48] sm:$0xff] %v282
                  %v284 = vld [vmem:[%s262 + $0xa0] sm:$0xff]
                  %285 = vst [vmem:[%s263 + $0x50] sm:$0xff] %v284
                  %v286 = vld [vmem:[%s262 + $0xb0] sm:$0xff]
                  %287 = vst [vmem:[%s263 + $0x58] sm:$0xff] %v286
                  %v288 = vld [vmem:[%s262 + $0xc0] sm:$0xff]
                  %289 = vst [vmem:[%s263 + $0x60] sm:$0xff] %v288
                  %v290 = vld [vmem:[%s262 + $0xd0] sm:$0xff]
                  %291 = vst [vmem:[%s263 + $0x68] sm:$0xff] %v290
                  %v292 = vld [vmem:[%s262 + $0xe0] sm:$0xff]
                  %293 = vst [vmem:[%s263 + $0x70] sm:$0xff] %v292
                  %v294 = vld [vmem:[%s262 + $0xf0] sm:$0xff]
                  %295 = vst [vmem:[%s263 + $0x78] sm:$0xff] %v294
                  %v296 = vld [vmem:[%s262 + $0x100] sm:$0xff]
                  %297 = vst [vmem:[%s263 + $0x80] sm:$0xff] %v296
                  %v298 = vld [vmem:[%s262 + $0x110] sm:$0xff]
                  %299 = vst [vmem:[%s263 + $0x88] sm:$0xff] %v298
                  %v300 = vld [vmem:[%s262 + $0x120] sm:$0xff]
                  %301 = vst [vmem:[%s263 + $0x90] sm:$0xff] %v300
                  %v302 = vld [vmem:[%s262 + $0x130] sm:$0xff]
                  %303 = vst [vmem:[%s263 + $0x98] sm:$0xff] %v302
                  %v304 = vld [vmem:[%s262 + $0x140] sm:$0xff]
                  %305 = vst [vmem:[%s263 + $0xa0] sm:$0xff] %v304
                  %v306 = vld [vmem:[%s262 + $0x150] sm:$0xff]
                  %307 = vst [vmem:[%s263 + $0xa8] sm:$0xff] %v306
                  %v308 = vld [vmem:[%s262 + $0x160] sm:$0xff]
                  %309 = vst [vmem:[%s263 + $0xb0] sm:$0xff] %v308
                  %v310 = vld [vmem:[%s262 + $0x170] sm:$0xff]
                  %311 = vst [vmem:[%s263 + $0xb8] sm:$0xff] %v310
                  %v312 = vld [vmem:[%s262 + $0x180] sm:$0xff]
                  %313 = vst [vmem:[%s263 + $0xc0] sm:$0xff] %v312
                  %v314 = vld [vmem:[%s262 + $0x190] sm:$0xff]
                  %315 = vst [vmem:[%s263 + $0xc8] sm:$0xff] %v314
                  %v316 = vld [vmem:[%s262 + $0x1a0] sm:$0xff]
                  %317 = vst [vmem:[%s263 + $0xd0] sm:$0xff] %v316
                  %v318 = vld [vmem:[%s262 + $0x1b0] sm:$0xff]
                  %319 = vst [vmem:[%s263 + $0xd8] sm:$0xff] %v318
                  %v320 = vld [vmem:[%s262 + $0x1c0] sm:$0xff]
                  %321 = vst [vmem:[%s263 + $0xe0] sm:$0xff] %v320
                  %v322 = vld [vmem:[%s262 + $0x1d0] sm:$0xff]
                  %323 = vst [vmem:[%s263 + $0xe8] sm:$0xff] %v322
                  %v324 = vld [vmem:[%s262 + $0x1e0] sm:$0xff]
                  %325 = vst [vmem:[%s263 + $0xf0] sm:$0xff] %v324
                  %v326 = vld [vmem:[%s262 + $0x1f0] sm:$0xff]
                  %327 = vst [vmem:[%s263 + $0xf8] sm:$0xff] %v326
                $region52: #{tpu_custom_call.1} parent=46 // loop_footer
                  %s261 = sadd.s32 1, %s257
                $region53: #{tpu_custom_call.1} parent=46 // loop_footer_branch
                  %256 = sbr.rel target = $region49
                $region54: #{tpu_custom_call.1} parent=46 // loop_exit
                  _
              $region47: #{tpu_custom_call.1} parent=31 // pred_fallthru
                _
              // Predicated region
              $region55: #{tpu_custom_call.1} parent=31 // pred_check
                _
              $region56: #{tpu_custom_call.1} parent=31 // pred_check_branch
                %329 = sbr.rel target = $region58
              $region57: #{tpu_custom_call.1} parent=31 // pred_region
                _
              $region58: #{tpu_custom_call.1} parent=31 // pred_fallthru
                _
            $region32: #{tpu_custom_call.1} parent=27 // pred_fallthru
              _
            // Predicated region
            $region33: #{tpu_custom_call.1} parent=27 // pred_check
              _
            $region34: #{tpu_custom_call.1} parent=27 // pred_check_branch
              %179 = sbr.rel target = $region36
            $region35: #{tpu_custom_call.1} parent=27 // pred_region
              %s181 = ssub.s32 256, 1
              loop: start=0, step=1, limit=1
              $region37: #{tpu_custom_call.1} parent=35 // loop_pre_header
                _
              $region38: #{tpu_custom_call.1} parent=35 // loop_header
                %s183 = sphi 0, %s187
                %p184 = scmp.ge.s32.totalorder %s183, 1
                %s188 = sphi %s173, %s173
                %s189 = sphi %s167, %s167
              $region39: #{tpu_custom_call.1} parent=35 // loop_header_branch
                %186 = sbr.rel (%p184) target = $region43
              $region40: #{tpu_custom_call.1} parent=35 // loop_body
                %v190 = vld [vmem:[%s188] sm:%s181]
                %191 = vst [vmem:[%s189] sm:%s181] %v190
                %v192 = vld [vmem:[%s188 + $0x10] sm:%s181]
                %193 = vst [vmem:[%s189 + $0x8] sm:%s181] %v192
                %v194 = vld [vmem:[%s188 + $0x20] sm:%s181]
                %195 = vst [vmem:[%s189 + $0x10] sm:%s181] %v194
                %v196 = vld [vmem:[%s188 + $0x30] sm:%s181]
                %197 = vst [vmem:[%s189 + $0x18] sm:%s181] %v196
                %v198 = vld [vmem:[%s188 + $0x40] sm:%s181]
                %199 = vst [vmem:[%s189 + $0x20] sm:%s181] %v198
                %v200 = vld [vmem:[%s188 + $0x50] sm:%s181]
                %201 = vst [vmem:[%s189 + $0x28] sm:%s181] %v200
                %v202 = vld [vmem:[%s188 + $0x60] sm:%s181]
                %203 = vst [vmem:[%s189 + $0x30] sm:%s181] %v202
                %v204 = vld [vmem:[%s188 + $0x70] sm:%s181]
                %205 = vst [vmem:[%s189 + $0x38] sm:%s181] %v204
                %v206 = vld [vmem:[%s188 + $0x80] sm:%s181]
                %207 = vst [vmem:[%s189 + $0x40] sm:%s181] %v206
                %v208 = vld [vmem:[%s188 + $0x90] sm:%s181]
                %209 = vst [vmem:[%s189 + $0x48] sm:%s181] %v208
                %v210 = vld [vmem:[%s188 + $0xa0] sm:%s181]
                %211 = vst [vmem:[%s189 + $0x50] sm:%s181] %v210
                %v212 = vld [vmem:[%s188 + $0xb0] sm:%s181]
                %213 = vst [vmem:[%s189 + $0x58] sm:%s181] %v212
                %v214 = vld [vmem:[%s188 + $0xc0] sm:%s181]
                %215 = vst [vmem:[%s189 + $0x60] sm:%s181] %v214
                %v216 = vld [vmem:[%s188 + $0xd0] sm:%s181]
                %217 = vst [vmem:[%s189 + $0x68] sm:%s181] %v216
                %v218 = vld [vmem:[%s188 + $0xe0] sm:%s181]
                %219 = vst [vmem:[%s189 + $0x70] sm:%s181] %v218
                %v220 = vld [vmem:[%s188 + $0xf0] sm:%s181]
                %221 = vst [vmem:[%s189 + $0x78] sm:%s181] %v220
                %v222 = vld [vmem:[%s188 + $0x100] sm:%s181]
                %223 = vst [vmem:[%s189 + $0x80] sm:%s181] %v222
                %v224 = vld [vmem:[%s188 + $0x110] sm:%s181]
                %225 = vst [vmem:[%s189 + $0x88] sm:%s181] %v224
                %v226 = vld [vmem:[%s188 + $0x120] sm:%s181]
                %227 = vst [vmem:[%s189 + $0x90] sm:%s181] %v226
                %v228 = vld [vmem:[%s188 + $0x130] sm:%s181]
                %229 = vst [vmem:[%s189 + $0x98] sm:%s181] %v228
                %v230 = vld [vmem:[%s188 + $0x140] sm:%s181]
                %231 = vst [vmem:[%s189 + $0xa0] sm:%s181] %v230
                %v232 = vld [vmem:[%s188 + $0x150] sm:%s181]
                %233 = vst [vmem:[%s189 + $0xa8] sm:%s181] %v232
                %v234 = vld [vmem:[%s188 + $0x160] sm:%s181]
                %235 = vst [vmem:[%s189 + $0xb0] sm:%s181] %v234
                %v236 = vld [vmem:[%s188 + $0x170] sm:%s181]
                %237 = vst [vmem:[%s189 + $0xb8] sm:%s181] %v236
                %v238 = vld [vmem:[%s188 + $0x180] sm:%s181]
                %239 = vst [vmem:[%s189 + $0xc0] sm:%s181] %v238
                %v240 = vld [vmem:[%s188 + $0x190] sm:%s181]
                %241 = vst [vmem:[%s189 + $0xc8] sm:%s181] %v240
                %v242 = vld [vmem:[%s188 + $0x1a0] sm:%s181]
                %243 = vst [vmem:[%s189 + $0xd0] sm:%s181] %v242
                %v244 = vld [vmem:[%s188 + $0x1b0] sm:%s181]
                %245 = vst [vmem:[%s189 + $0xd8] sm:%s181] %v244
                %v246 = vld [vmem:[%s188 + $0x1c0] sm:%s181]
                %247 = vst [vmem:[%s189 + $0xe0] sm:%s181] %v246
                %v248 = vld [vmem:[%s188 + $0x1d0] sm:%s181]
                %249 = vst [vmem:[%s189 + $0xe8] sm:%s181] %v248
                %v250 = vld [vmem:[%s188 + $0x1e0] sm:%s181]
                %251 = vst [vmem:[%s189 + $0xf0] sm:%s181] %v250
                %v252 = vld [vmem:[%s188 + $0x1f0] sm:%s181]
                %253 = vst [vmem:[%s189 + $0xf8] sm:%s181] %v252
              $region41: #{tpu_custom_call.1} parent=35 // loop_footer
                %s187 = sadd.s32 1, %s183
              $region42: #{tpu_custom_call.1} parent=35 // loop_footer_branch
                %182 = sbr.rel target = $region38
              $region43: #{tpu_custom_call.1} parent=35 // loop_exit
                _
            $region36: #{tpu_custom_call.1} parent=27 // pred_fallthru
              _
          $region28: #{tpu_custom_call.1} parent=23 // pred_fallthru
            _
          %330 = vnop
        $region24: #{tpu_custom_call.1} parent=19 // pred_fallthru
          _
        // Predicated region
        $region59: #{tpu_custom_call.1} parent=19 // pred_check
          %p331 = pneg %p84
        $region60: #{tpu_custom_call.1} parent=19 // pred_check_branch
          %333 = sbr.rel (%p331) target = $region62
        $region61: #{tpu_custom_call.1} parent=19 // pred_region
          %s334 = sand.u32 %s74, 1
          %s335 = sand.u32 %s74, 1
          %s336 = smul.addr %s335, 256
          %s337 = scalar_lea.vmem [#allocation4], %s336
          %s338 = ssub.s32 %s20, 1
          %p339 = scmp.gt.s32.totalorder %s338, 0
          %s340 = scalar_select %p339, %s338, 0
          %s341 = smul.addr %s19, 64
          %s342 = sadd.s32 %s340, %s341
          %s343 = smul.addr %s342, 8
          %s344 = scalar_lea.vmem %s1, %s343
          // Predicated region
          $region63: #{tpu_custom_call.1} parent=61 // pred_check
            _
          $region64: #{tpu_custom_call.1} parent=61 // pred_check_branch
            %346 = sbr.rel (0) target = $region66
          $region65: #{tpu_custom_call.1} parent=61 // pred_region
            // Predicated region
            $region67: #{tpu_custom_call.1} parent=65 // pred_check
              _
            $region68: #{tpu_custom_call.1} parent=65 // pred_check_branch
              %348 = sbr.rel (0) target = $region70
            $region69: #{tpu_custom_call.1} parent=65 // pred_region
              // Predicated region
              $region82: #{tpu_custom_call.1} parent=69 // pred_check
                _
              $region83: #{tpu_custom_call.1} parent=69 // pred_check_branch
                %426 = sbr.rel (0) target = $region85
              $region84: #{tpu_custom_call.1} parent=69 // pred_region
                loop: start=0, step=1, limit=1
                $region86: #{tpu_custom_call.1} parent=84 // loop_pre_header
                  _
                $region87: #{tpu_custom_call.1} parent=84 // loop_header
                  %s428 = sphi 0, %s432
                  %p429 = scmp.ge.s32.totalorder %s428, 1
                  %s433 = sphi %s344, %s344
                  %s434 = sphi %s337, %s337
                $region88: #{tpu_custom_call.1} parent=84 // loop_header_branch
                  %431 = sbr.rel (%p429) target = $region92
                $region89: #{tpu_custom_call.1} parent=84 // loop_body
                  %v435 = vld [vmem:[%s433] sm:$0xff]
                  %436 = vst [vmem:[%s434] sm:$0xff] %v435
                  %v437 = vld [vmem:[%s433 + $0x10] sm:$0xff]
                  %438 = vst [vmem:[%s434 + $0x8] sm:$0xff] %v437
                  %v439 = vld [vmem:[%s433 + $0x20] sm:$0xff]
                  %440 = vst [vmem:[%s434 + $0x10] sm:$0xff] %v439
                  %v441 = vld [vmem:[%s433 + $0x30] sm:$0xff]
                  %442 = vst [vmem:[%s434 + $0x18] sm:$0xff] %v441
                  %v443 = vld [vmem:[%s433 + $0x40] sm:$0xff]
                  %444 = vst [vmem:[%s434 + $0x20] sm:$0xff] %v443
                  %v445 = vld [vmem:[%s433 + $0x50] sm:$0xff]
                  %446 = vst [vmem:[%s434 + $0x28] sm:$0xff] %v445
                  %v447 = vld [vmem:[%s433 + $0x60] sm:$0xff]
                  %448 = vst [vmem:[%s434 + $0x30] sm:$0xff] %v447
                  %v449 = vld [vmem:[%s433 + $0x70] sm:$0xff]
                  %450 = vst [vmem:[%s434 + $0x38] sm:$0xff] %v449
                  %v451 = vld [vmem:[%s433 + $0x80] sm:$0xff]
                  %452 = vst [vmem:[%s434 + $0x40] sm:$0xff] %v451
                  %v453 = vld [vmem:[%s433 + $0x90] sm:$0xff]
                  %454 = vst [vmem:[%s434 + $0x48] sm:$0xff] %v453
                  %v455 = vld [vmem:[%s433 + $0xa0] sm:$0xff]
                  %456 = vst [vmem:[%s434 + $0x50] sm:$0xff] %v455
                  %v457 = vld [vmem:[%s433 + $0xb0] sm:$0xff]
                  %458 = vst [vmem:[%s434 + $0x58] sm:$0xff] %v457
                  %v459 = vld [vmem:[%s433 + $0xc0] sm:$0xff]
                  %460 = vst [vmem:[%s434 + $0x60] sm:$0xff] %v459
                  %v461 = vld [vmem:[%s433 + $0xd0] sm:$0xff]
                  %462 = vst [vmem:[%s434 + $0x68] sm:$0xff] %v461
                  %v463 = vld [vmem:[%s433 + $0xe0] sm:$0xff]
                  %464 = vst [vmem:[%s434 + $0x70] sm:$0xff] %v463
                  %v465 = vld [vmem:[%s433 + $0xf0] sm:$0xff]
                  %466 = vst [vmem:[%s434 + $0x78] sm:$0xff] %v465
                  %v467 = vld [vmem:[%s433 + $0x100] sm:$0xff]
                  %468 = vst [vmem:[%s434 + $0x80] sm:$0xff] %v467
                  %v469 = vld [vmem:[%s433 + $0x110] sm:$0xff]
                  %470 = vst [vmem:[%s434 + $0x88] sm:$0xff] %v469
                  %v471 = vld [vmem:[%s433 + $0x120] sm:$0xff]
                  %472 = vst [vmem:[%s434 + $0x90] sm:$0xff] %v471
                  %v473 = vld [vmem:[%s433 + $0x130] sm:$0xff]
                  %474 = vst [vmem:[%s434 + $0x98] sm:$0xff] %v473
                  %v475 = vld [vmem:[%s433 + $0x140] sm:$0xff]
                  %476 = vst [vmem:[%s434 + $0xa0] sm:$0xff] %v475
                  %v477 = vld [vmem:[%s433 + $0x150] sm:$0xff]
                  %478 = vst [vmem:[%s434 + $0xa8] sm:$0xff] %v477
                  %v479 = vld [vmem:[%s433 + $0x160] sm:$0xff]
                  %480 = vst [vmem:[%s434 + $0xb0] sm:$0xff] %v479
                  %v481 = vld [vmem:[%s433 + $0x170] sm:$0xff]
                  %482 = vst [vmem:[%s434 + $0xb8] sm:$0xff] %v481
                  %v483 = vld [vmem:[%s433 + $0x180] sm:$0xff]
                  %484 = vst [vmem:[%s434 + $0xc0] sm:$0xff] %v483
                  %v485 = vld [vmem:[%s433 + $0x190] sm:$0xff]
                  %486 = vst [vmem:[%s434 + $0xc8] sm:$0xff] %v485
                  %v487 = vld [vmem:[%s433 + $0x1a0] sm:$0xff]
                  %488 = vst [vmem:[%s434 + $0xd0] sm:$0xff] %v487
                  %v489 = vld [vmem:[%s433 + $0x1b0] sm:$0xff]
                  %490 = vst [vmem:[%s434 + $0xd8] sm:$0xff] %v489
                  %v491 = vld [vmem:[%s433 + $0x1c0] sm:$0xff]
                  %492 = vst [vmem:[%s434 + $0xe0] sm:$0xff] %v491
                  %v493 = vld [vmem:[%s433 + $0x1d0] sm:$0xff]
                  %494 = vst [vmem:[%s434 + $0xe8] sm:$0xff] %v493
                  %v495 = vld [vmem:[%s433 + $0x1e0] sm:$0xff]
                  %496 = vst [vmem:[%s434 + $0xf0] sm:$0xff] %v495
                  %v497 = vld [vmem:[%s433 + $0x1f0] sm:$0xff]
                  %498 = vst [vmem:[%s434 + $0xf8] sm:$0xff] %v497
                $region90: #{tpu_custom_call.1} parent=84 // loop_footer
                  %s432 = sadd.s32 1, %s428
                $region91: #{tpu_custom_call.1} parent=84 // loop_footer_branch
                  %427 = sbr.rel target = $region87
                $region92: #{tpu_custom_call.1} parent=84 // loop_exit
                  _
              $region85: #{tpu_custom_call.1} parent=69 // pred_fallthru
                _
              // Predicated region
              $region93: #{tpu_custom_call.1} parent=69 // pred_check
                _
              $region94: #{tpu_custom_call.1} parent=69 // pred_check_branch
                %500 = sbr.rel target = $region96
              $region95: #{tpu_custom_call.1} parent=69 // pred_region
                _
              $region96: #{tpu_custom_call.1} parent=69 // pred_fallthru
                _
            $region70: #{tpu_custom_call.1} parent=65 // pred_fallthru
              _
            // Predicated region
            $region71: #{tpu_custom_call.1} parent=65 // pred_check
              _
            $region72: #{tpu_custom_call.1} parent=65 // pred_check_branch
              %350 = sbr.rel target = $region74
            $region73: #{tpu_custom_call.1} parent=65 // pred_region
              %s352 = ssub.s32 256, 1
              loop: start=0, step=1, limit=1
              $region75: #{tpu_custom_call.1} parent=73 // loop_pre_header
                _
              $region76: #{tpu_custom_call.1} parent=73 // loop_header
                %s354 = sphi 0, %s358
                %p355 = scmp.ge.s32.totalorder %s354, 1
                %s359 = sphi %s344, %s344
                %s360 = sphi %s337, %s337
              $region77: #{tpu_custom_call.1} parent=73 // loop_header_branch
                %357 = sbr.rel (%p355) target = $region81
              $region78: #{tpu_custom_call.1} parent=73 // loop_body
                %v361 = vld [vmem:[%s359] sm:%s352]
                %362 = vst [vmem:[%s360] sm:%s352] %v361
                %v363 = vld [vmem:[%s359 + $0x10] sm:%s352]
                %364 = vst [vmem:[%s360 + $0x8] sm:%s352] %v363
                %v365 = vld [vmem:[%s359 + $0x20] sm:%s352]
                %366 = vst [vmem:[%s360 + $0x10] sm:%s352] %v365
                %v367 = vld [vmem:[%s359 + $0x30] sm:%s352]
                %368 = vst [vmem:[%s360 + $0x18] sm:%s352] %v367
                %v369 = vld [vmem:[%s359 + $0x40] sm:%s352]
                %370 = vst [vmem:[%s360 + $0x20] sm:%s352] %v369
                %v371 = vld [vmem:[%s359 + $0x50] sm:%s352]
                %372 = vst [vmem:[%s360 + $0x28] sm:%s352] %v371
                %v373 = vld [vmem:[%s359 + $0x60] sm:%s352]
                %374 = vst [vmem:[%s360 + $0x30] sm:%s352] %v373
                %v375 = vld [vmem:[%s359 + $0x70] sm:%s352]
                %376 = vst [vmem:[%s360 + $0x38] sm:%s352] %v375
                %v377 = vld [vmem:[%s359 + $0x80] sm:%s352]
                %378 = vst [vmem:[%s360 + $0x40] sm:%s352] %v377
                %v379 = vld [vmem:[%s359 + $0x90] sm:%s352]
                %380 = vst [vmem:[%s360 + $0x48] sm:%s352] %v379
                %v381 = vld [vmem:[%s359 + $0xa0] sm:%s352]
                %382 = vst [vmem:[%s360 + $0x50] sm:%s352] %v381
                %v383 = vld [vmem:[%s359 + $0xb0] sm:%s352]
                %384 = vst [vmem:[%s360 + $0x58] sm:%s352] %v383
                %v385 = vld [vmem:[%s359 + $0xc0] sm:%s352]
                %386 = vst [vmem:[%s360 + $0x60] sm:%s352] %v385
                %v387 = vld [vmem:[%s359 + $0xd0] sm:%s352]
                %388 = vst [vmem:[%s360 + $0x68] sm:%s352] %v387
                %v389 = vld [vmem:[%s359 + $0xe0] sm:%s352]
                %390 = vst [vmem:[%s360 + $0x70] sm:%s352] %v389
                %v391 = vld [vmem:[%s359 + $0xf0] sm:%s352]
                %392 = vst [vmem:[%s360 + $0x78] sm:%s352] %v391
                %v393 = vld [vmem:[%s359 + $0x100] sm:%s352]
                %394 = vst [vmem:[%s360 + $0x80] sm:%s352] %v393
                %v395 = vld [vmem:[%s359 + $0x110] sm:%s352]
                %396 = vst [vmem:[%s360 + $0x88] sm:%s352] %v395
                %v397 = vld [vmem:[%s359 + $0x120] sm:%s352]
                %398 = vst [vmem:[%s360 + $0x90] sm:%s352] %v397
                %v399 = vld [vmem:[%s359 + $0x130] sm:%s352]
                %400 = vst [vmem:[%s360 + $0x98] sm:%s352] %v399
                %v401 = vld [vmem:[%s359 + $0x140] sm:%s352]
                %402 = vst [vmem:[%s360 + $0xa0] sm:%s352] %v401
                %v403 = vld [vmem:[%s359 + $0x150] sm:%s352]
                %404 = vst [vmem:[%s360 + $0xa8] sm:%s352] %v403
                %v405 = vld [vmem:[%s359 + $0x160] sm:%s352]
                %406 = vst [vmem:[%s360 + $0xb0] sm:%s352] %v405
                %v407 = vld [vmem:[%s359 + $0x170] sm:%s352]
                %408 = vst [vmem:[%s360 + $0xb8] sm:%s352] %v407
                %v409 = vld [vmem:[%s359 + $0x180] sm:%s352]
                %410 = vst [vmem:[%s360 + $0xc0] sm:%s352] %v409
                %v411 = vld [vmem:[%s359 + $0x190] sm:%s352]
                %412 = vst [vmem:[%s360 + $0xc8] sm:%s352] %v411
                %v413 = vld [vmem:[%s359 + $0x1a0] sm:%s352]
                %414 = vst [vmem:[%s360 + $0xd0] sm:%s352] %v413
                %v415 = vld [vmem:[%s359 + $0x1b0] sm:%s352]
                %416 = vst [vmem:[%s360 + $0xd8] sm:%s352] %v415
                %v417 = vld [vmem:[%s359 + $0x1c0] sm:%s352]
                %418 = vst [vmem:[%s360 + $0xe0] sm:%s352] %v417
                %v419 = vld [vmem:[%s359 + $0x1d0] sm:%s352]
                %420 = vst [vmem:[%s360 + $0xe8] sm:%s352] %v419
                %v421 = vld [vmem:[%s359 + $0x1e0] sm:%s352]
                %422 = vst [vmem:[%s360 + $0xf0] sm:%s352] %v421
                %v423 = vld [vmem:[%s359 + $0x1f0] sm:%s352]
                %424 = vst [vmem:[%s360 + $0xf8] sm:%s352] %v423
              $region79: #{tpu_custom_call.1} parent=73 // loop_footer
                %s358 = sadd.s32 1, %s354
              $region80: #{tpu_custom_call.1} parent=73 // loop_footer_branch
                %353 = sbr.rel target = $region76
              $region81: #{tpu_custom_call.1} parent=73 // loop_exit
                _
            $region74: #{tpu_custom_call.1} parent=65 // pred_fallthru
              _
          $region66: #{tpu_custom_call.1} parent=61 // pred_fallthru
            _
          %501 = vnop
        $region62: #{tpu_custom_call.1} parent=19 // pred_fallthru
          _
      $region20: #{tpu_custom_call.1} parent=5 // pred_fallthru
        _
      %p502 = scmp.le.s32.totalorder 1, %s12
      %p503 = scmp.lt.s32.totalorder %s12, 5
      %p504 = pnand %p502, %p503
      %p505 = pneg %p504
      // Predicated region
      $region97: #{tpu_custom_call.1} parent=5 // pred_check
        _
      $region98: #{tpu_custom_call.1} parent=5 // pred_check_branch
        %507 = sbr.rel (%p504) target = $region100
      $region99: #{tpu_custom_call.1} parent=5 // pred_region
        %s508 = ssub.s32 %s12, 1
        %s509 = sand.u32 %s43, 1
        %s510 = sand.u32 %s43, 1
        %s511 = smul.addr %s510, 256
        %s512 = scalar_lea.vmem [#allocation3], %s511
        // Predicated region
        $region101: #{tpu_custom_call.1} parent=99 // pred_check
          %p513 = pneg %p56
        $region102: #{tpu_custom_call.1} parent=99 // pred_check_branch
          %515 = sbr.rel (%p513) target = $region104
        $region103: #{tpu_custom_call.1} parent=99 // pred_region
          _
        $region104: #{tpu_custom_call.1} parent=99 // pred_fallthru
          _
        %s516 = sand.u32 %s77, 1
        %s517 = sand.u32 %s77, 1
        %s518 = smul.addr %s517, 256
        %s519 = scalar_lea.vmem [#allocation4], %s518
        // Predicated region
        $region105: #{tpu_custom_call.1} parent=99 // pred_check
          %p520 = pneg %p90
        $region106: #{tpu_custom_call.1} parent=99 // pred_check_branch
          %522 = sbr.rel (%p520) target = $region108
        $region107: #{tpu_custom_call.1} parent=99 // pred_region
          _
        $region108: #{tpu_custom_call.1} parent=99 // pred_fallthru
          _
        %s523 = sand.u32 %s43, 1
        %s524 = sand.u32 %s43, 1
        %s525 = smul.addr %s524, 256
        %s526 = scalar_lea.vmem [#allocation3], %s525
        %p527 = pneg %p56
        %p528 = pneg %p53
        %s529 = sand.u32 %s77, 1
        %s530 = sand.u32 %s77, 1
        %s531 = smul.addr %s530, 256
        %s532 = scalar_lea.vmem [#allocation4], %s531
        %p533 = pneg %p90
        %p534 = pneg %p87
        %p535 = pneg %p111
        %p536 = pneg %p108
        %p537 = pneg %p139
        %p538 = pneg %p136
        %s539 = sand.u32 %s126, 1
        %s540 = scalar_lea.sflag [#allocation6], %s539
        %s541 = sand.u32 %s126, 1
        %s542 = smul.addr %s541, 8
        %s543 = scalar_lea.vmem [#allocation5], %s542
        %p544 = scmp.lt.s32.totalorder %s22, 1
        %s545 = scalar_select %p544, %s22, 1
        %s546 = ssub.s32 %s22, 1
        %p547 = scmp.gt.s32.totalorder %s546, 0
        %s548 = scalar_select %p547, %s546, 0
        %s549 = smul.u32 %s22, 128
        %v550 = vld [vmem:[%s2] sm:$0xff]
        %v551 = vld [vmem:[%s2 + $0x8] sm:$0xff]
        %v552 = vld [vmem:[%s512] sm:$0xff]
        %v553 = vld [vmem:[%s512 + $0x8] sm:$0xff]
        %v554 = vld [vmem:[%s512 + $0x10] sm:$0xff]
        %v555 = vld [vmem:[%s512 + $0x18] sm:$0xff]
        %v556 = vld [vmem:[%s512 + $0x20] sm:$0xff]
        %v557 = vld [vmem:[%s512 + $0x28] sm:$0xff]
        %v558 = vld [vmem:[%s512 + $0x30] sm:$0xff]
        %v559 = vld [vmem:[%s512 + $0x38] sm:$0xff]
        %v560 = vld [vmem:[%s512 + $0x40] sm:$0xff]
        %v561 = vld [vmem:[%s512 + $0x48] sm:$0xff]
        %v562 = vld [vmem:[%s512 + $0x50] sm:$0xff]
        %v563 = vld [vmem:[%s512 + $0x58] sm:$0xff]
        %v564 = vld [vmem:[%s512 + $0x60] sm:$0xff]
        %v565 = vld [vmem:[%s512 + $0x68] sm:$0xff]
        %v566 = vld [vmem:[%s512 + $0x70] sm:$0xff]
        %v567 = vld [vmem:[%s512 + $0x78] sm:$0xff]
        %v568 = vld [vmem:[%s512 + $0x80] sm:$0xff]
        %v569 = vld [vmem:[%s512 + $0x88] sm:$0xff]
        %v570 = vld [vmem:[%s512 + $0x90] sm:$0xff]
        %v571 = vld [vmem:[%s512 + $0x98] sm:$0xff]
        %v572 = vld [vmem:[%s512 + $0xa0] sm:$0xff]
        %v573 = vld [vmem:[%s512 + $0xa8] sm:$0xff]
        %v574 = vld [vmem:[%s512 + $0xb0] sm:$0xff]
        %v575 = vld [vmem:[%s512 + $0xb8] sm:$0xff]
        %v576 = vld [vmem:[%s512 + $0xc0] sm:$0xff]
        %v577 = vld [vmem:[%s512 + $0xc8] sm:$0xff]
        %v578 = vld [vmem:[%s512 + $0xd0] sm:$0xff]
        %v579 = vld [vmem:[%s512 + $0xd8] sm:$0xff]
        %v580 = vld [vmem:[%s512 + $0xe0] sm:$0xff]
        %v581 = vld [vmem:[%s512 + $0xe8] sm:$0xff]
        %v582 = vld [vmem:[%s512 + $0xf0] sm:$0xff]
        %v583 = vld [vmem:[%s512 + $0xf8] sm:$0xff]
        %v584 = vpack.c.bf16 %v553, %v552
        %v585 = vpack.c.bf16 %v555, %v554
        %v586 = vpack.c.bf16 %v557, %v556
        %v587 = vpack.c.bf16 %v559, %v558
        %v588 = vpack.c.bf16 %v561, %v560
        %v589 = vpack.c.bf16 %v563, %v562
        %v590 = vpack.c.bf16 %v565, %v564
        %v591 = vpack.c.bf16 %v567, %v566
        %v592 = vpack.c.bf16 %v569, %v568
        %v593 = vpack.c.bf16 %v571, %v570
        %v594 = vpack.c.bf16 %v573, %v572
        %v595 = vpack.c.bf16 %v575, %v574
        %v596 = vpack.c.bf16 %v577, %v576
        %v597 = vpack.c.bf16 %v579, %v578
        %v598 = vpack.c.bf16 %v581, %v580
        %v599 = vpack.c.bf16 %v583, %v582
        %v602 = vunpack.c.l.b16 %v550
        %v603 = vunpack.c.h.b16 %v550
        %v604 = vunpack.c.l.b16 %v551
        %v605 = vunpack.c.h.b16 %v551
        %v606 = vpack.c.b16 %v604, %v602
        %v607 = vpack.c.b16 %v605, %v603
        %610 = vmatpush.bf16.msra.mxu0 %v591
        %611 = vmatpush.bf16.msra.mxu0 %v590
        %612 = vmatpush.bf16.msra.mxu0 %v589
        %613 = vmatpush.bf16.msra.mxu0 %v588
        %614 = vmatpush.bf16.msra.mxu0 %v587
        %615 = vmatpush.bf16.msra.mxu0 %v586
        %616 = vmatpush.bf16.msra.mxu0 %v585
        %617 = vmatpush.bf16.msra.mxu0 %v584
        %618 = vmatmul.bf16.gmra.mxu0 %v606
        %v619 = vpop.f32.mrf.mxu0
        %v620 = vadd.f32 0.0, %v619
        %v621 = vpop.f32.mrf.mxu0
        %v622 = vadd.f32 0.0, %v621
        %623 = vdwg.mxu0
        %624 = vmatpush.bf16.msra.mxu0 %v599
        %625 = vmatpush.bf16.msra.mxu0 %v598
        %626 = vmatpush.bf16.msra.mxu0 %v597
        %627 = vmatpush.bf16.msra.mxu0 %v596
        %628 = vmatpush.bf16.msra.mxu0 %v595
        %629 = vmatpush.bf16.msra.mxu0 %v594
        %630 = vmatpush.bf16.msra.mxu0 %v593
        %631 = vmatpush.bf16.msra.mxu0 %v592
        %632 = vmatmul.bf16.gmra.mxu0 %v607
        %v633 = vpop.f32.mrf.mxu0
        %v634 = vadd.f32 %v620, %v633
        %v635 = vpop.f32.mrf.mxu0
        %v636 = vadd.f32 %v622, %v635
        %637 = vdwg.mxu0
        %v638 = vlaneseq
        %v639 = vand.u32 %v638, 127
        %v640 = vstv %s549
        %v641 = vadd.s32 %v640, %v639
        %vm642 = vcmp.lt.s32.totalorder %v641, 200
        %v643 = vsel %vm642, 1, 0
        %vm644 = vcmp.eq.s32.totalorder %v643, 1
        %v645 = vsel %vm644, %v634, 0.0
        %v646 = vsel %vm644, %v636, 0.0
        %v647 = vld [vmem:[%s519] sm:$0xff]
        %v648 = vld [vmem:[%s519 + $0x8] sm:$0xff]
        %v649 = vld [vmem:[%s519 + $0x10] sm:$0xff]
        %v650 = vld [vmem:[%s519 + $0x18] sm:$0xff]
        %v651 = vld [vmem:[%s519 + $0x20] sm:$0xff]
        %v652 = vld [vmem:[%s519 + $0x28] sm:$0xff]
        %v653 = vld [vmem:[%s519 + $0x30] sm:$0xff]
        %v654 = vld [vmem:[%s519 + $0x38] sm:$0xff]
        %v655 = vld [vmem:[%s519 + $0x40] sm:$0xff]
        %v656 = vld [vmem:[%s519 + $0x48] sm:$0xff]
        %v657 = vld [vmem:[%s519 + $0x50] sm:$0xff]
        %v658 = vld [vmem:[%s519 + $0x58] sm:$0xff]
        %v659 = vld [vmem:[%s519 + $0x60] sm:$0xff]
        %v660 = vld [vmem:[%s519 + $0x68] sm:$0xff]
        %v661 = vld [vmem:[%s519 + $0x70] sm:$0xff]
        %v662 = vld [vmem:[%s519 + $0x78] sm:$0xff]
        %v663 = vld [vmem:[%s519 + $0x80] sm:$0xff]
        %v664 = vld [vmem:[%s519 + $0x88] sm:$0xff]
        %v665 = vld [vmem:[%s519 + $0x90] sm:$0xff]
        %v666 = vld [vmem:[%s519 + $0x98] sm:$0xff]
        %v667 = vld [vmem:[%s519 + $0xa0] sm:$0xff]
        %v668 = vld [vmem:[%s519 + $0xa8] sm:$0xff]
        %v669 = vld [vmem:[%s519 + $0xb0] sm:$0xff]
        %v670 = vld [vmem:[%s519 + $0xb8] sm:$0xff]
        %v671 = vld [vmem:[%s519 + $0xc0] sm:$0xff]
        %v672 = vld [vmem:[%s519 + $0xc8] sm:$0xff]
        %v673 = vld [vmem:[%s519 + $0xd0] sm:$0xff]
        %v674 = vld [vmem:[%s519 + $0xd8] sm:$0xff]
        %v675 = vld [vmem:[%s519 + $0xe0] sm:$0xff]
        %v676 = vld [vmem:[%s519 + $0xe8] sm:$0xff]
        %v677 = vld [vmem:[%s519 + $0xf0] sm:$0xff]
        %v678 = vld [vmem:[%s519 + $0xf8] sm:$0xff]
        %v679 = vpack.c.bf16 %v648, %v647
        %v680 = vpack.c.bf16 %v650, %v649
        %v681 = vpack.c.bf16 %v652, %v651
        %v682 = vpack.c.bf16 %v654, %v653
        %v683 = vpack.c.bf16 %v656, %v655
        %v684 = vpack.c.bf16 %v658, %v657
        %v685 = vpack.c.bf16 %v660, %v659
        %v686 = vpack.c.bf16 %v662, %v661
        %v687 = vpack.c.bf16 %v664, %v663
        %v688 = vpack.c.bf16 %v666, %v665
        %v689 = vpack.c.bf16 %v668, %v667
        %v690 = vpack.c.bf16 %v670, %v669
        %v691 = vpack.c.bf16 %v672, %v671
        %v692 = vpack.c.bf16 %v674, %v673
        %v693 = vpack.c.bf16 %v676, %v675
        %v694 = vpack.c.bf16 %v678, %v677
        %v695 = vpack.c.b16 %v604, %v604
        %v696 = vpack.c.b16 %v605, %v605
        %715 = vrot.lane.b32.xlu0 %v679, 1
        %v716 = vpop.permute.xlu0 %715
        %717 = vrot.lane.b32.xlu0 %v680, 1
        %v718 = vpop.permute.xlu0 %717
        %719 = vrot.lane.b32.xlu0 %v681, 1
        %v720 = vpop.permute.xlu0 %719
        %721 = vrot.lane.b32.xlu0 %v682, 1
        %v722 = vpop.permute.xlu0 %721
        %723 = vrot.lane.b32.xlu0 %v683, 1
        %v724 = vpop.permute.xlu0 %723
        %725 = vrot.lane.b32.xlu0 %v684, 1
        %v726 = vpop.permute.xlu0 %725
        %727 = vrot.lane.b32.xlu0 %v685, 1
        %v728 = vpop.permute.xlu0 %727
        %729 = vrot.lane.b32.xlu0 %v686, 1
        %v730 = vpop.permute.xlu0 %729
        %731 = vrot.lane.b32.xlu0 %v687, 1
        %v732 = vpop.permute.xlu0 %731
        %733 = vrot.lane.b32.xlu0 %v688, 1
        %v734 = vpop.permute.xlu0 %733
        %735 = vrot.lane.b32.xlu0 %v689, 1
        %v736 = vpop.permute.xlu0 %735
        %737 = vrot.lane.b32.xlu0 %v690, 1
        %v738 = vpop.permute.xlu0 %737
        %739 = vrot.lane.b32.xlu0 %v691, 1
        %v740 = vpop.permute.xlu0 %739
        %741 = vrot.lane.b32.xlu0 %v692, 1
        %v742 = vpop.permute.xlu0 %741
        %743 = vrot.lane.b32.xlu0 %v693, 1
        %v744 = vpop.permute.xlu0 %743
        %745 = vrot.lane.b32.xlu0 %v694, 1
        %v746 = vpop.permute.xlu0 %745
        %763 = vmatpush.bf16.msra.mxu0 %v730
        %764 = vmatpush.bf16.msra.mxu0 %v728
        %765 = vmatpush.bf16.msra.mxu0 %v726
        %766 = vmatpush.bf16.msra.mxu0 %v724
        %767 = vmatpush.bf16.msra.mxu0 %v722
        %768 = vmatpush.bf16.msra.mxu0 %v720
        %769 = vmatpush.bf16.msra.mxu0 %v718
        %770 = vmatpush.bf16.msra.mxu0 %v716
        %771 = vmatmul.bf16.gmra.mxu0 %v695
        %v772 = vpop.f32.mrf.mxu0
        %v773 = vadd.f32 0.0, %v772
        %v774 = vpop.f32.mrf.mxu0
        %775 = vdwg.mxu0
        %776 = vmatpush.bf16.msra.mxu0 %v746
        %777 = vmatpush.bf16.msra.mxu0 %v744
        %778 = vmatpush.bf16.msra.mxu0 %v742
        %779 = vmatpush.bf16.msra.mxu0 %v740
        %780 = vmatpush.bf16.msra.mxu0 %v738
        %781 = vmatpush.bf16.msra.mxu0 %v736
        %782 = vmatpush.bf16.msra.mxu0 %v734
        %783 = vmatpush.bf16.msra.mxu0 %v732
        %784 = vmatmul.bf16.gmra.mxu0 %v696
        %v785 = vpop.f32.mrf.mxu0
        %v786 = vadd.f32 %v773, %v785
        %v787 = vpop.f32.mrf.mxu0
        %788 = vdwg.mxu0
        %s789 = ssub.s32 %s549, 1
        %v790 = vstv %s789
        %v791 = vadd.s32 %v790, %v639
        %vm792 = vcmp.ge.s32.totalorder %v791, 0
        %vm793 = vcmp.lt.s32.totalorder %v791, 200
        %vm794 = vmand %vm792, %vm793
        %v795 = vsel %vm794, 1, 0
        %vm796 = vcmp.eq.s32.totalorder %v795, 1
        %v797 = vsel %vm796, %v786, 0.0
        %799 = vrot.lane.b32.xlu0 %v797, 127
        %v800 = vpop.permute.xlu0 %799
        %vm802 = vcmask 1048568
        %803 = vst.msk [vmem:[#allocation2] sm:$0xff] %vm802, %v800
        %804 = vst [vmem:[#allocation2 + $0x8] sm:$0xff] %v646
        %v805 = vld [vmem:[#allocation2] sm:$0xff]
        %v806 = vld [vmem:[#allocation2 + $0x8] sm:$0xff]
        %809 = vrot.lane.b32.xlu0 %v805, 1
        %v810 = vpop.permute.xlu0 %809
        %811 = vrot.lane.b32.xlu0 %v806, 1
        %v812 = vpop.permute.xlu0 %811
        %vm813 = vcmask 7168
        %v814 = vsel %vm813, %v810, %v812
        %v816 = vadd.f32 %v645, %v814
        %817 = vst [vmem:[%s543] sm:$0xff] %v816
        %s818 = sand.u32 %s126, 1
        %s819 = scalar_lea.sflag [#allocation6], %s818
        %s820 = sand.u32 %s126, 1
        %s821 = smul.addr %s820, 8
        %s822 = scalar_lea.vmem [#allocation5], %s821
        // Predicated region
        $region109: #{tpu_custom_call.1} parent=99 // pred_check
          %p823 = pneg %p136
        $region110: #{tpu_custom_call.1} parent=99 // pred_check_branch
          %825 = sbr.rel (%p823) target = $region112
        $region111: #{tpu_custom_call.1} parent=99 // pred_region
          %827 = vsyncadd %s819, 0
          %s828 = smul.addr %s21, 2
          %s829 = sadd.s32 %s22, %s828
          %s830 = smul.addr %s829, 8
          %s831 = scalar_lea.hbm %s3, %s830
          %s833 = sshll.u32 %s822, 4
          %s834 = int_to_ptr.vmem [resolvable:$true] %s833
          %s835 = sshll.u32 %s831, 4
          %s836 = int_to_ptr.hbm [resolvable:$true] %s835
          %838 = dma.vmem_to_hbm [thread:$0]  %s834, 128, %s836, %s819
        $region112: #{tpu_custom_call.1} parent=99 // pred_fallthru
          _
      $region100: #{tpu_custom_call.1} parent=5 // pred_fallthru
        _
      %p839 = scmp.le.s32.totalorder 2, %s12
      // Predicated region
      $region113: #{tpu_custom_call.1} parent=5 // pred_check
        %p840 = pneg %p839
      $region114: #{tpu_custom_call.1} parent=5 // pred_check_branch
        %842 = sbr.rel (%p840) target = $region116
      $region115: #{tpu_custom_call.1} parent=5 // pred_region
        %s843 = ssub.s32 %s12, 2
        // Predicated region
        $region117: #{tpu_custom_call.1} parent=115 // pred_check
          %p844 = pneg %p142
        $region118: #{tpu_custom_call.1} parent=115 // pred_check_branch
          %846 = sbr.rel (%p844) target = $region120
        $region119: #{tpu_custom_call.1} parent=115 // pred_region
          %s847 = sand.u32 %s127, 1
          %s848 = scalar_lea.sflag [#allocation6], %s847
          %s849 = sand.u32 %s127, 1
          %s850 = smul.addr %s849, 8
          %s851 = scalar_lea.vmem [#allocation5], %s850
          %853 = dma.done %s848, 128
        $region120: #{tpu_custom_call.1} parent=115 // pred_fallthru
          _
      $region116: #{tpu_custom_call.1} parent=5 // pred_fallthru
        _
    $region6: #{tpu_custom_call.1} parent=1 // loop_footer
      %s16 = sadd.s32 1, %s12
    $region7: #{tpu_custom_call.1} parent=1 // loop_footer_branch
      %11 = sbr.rel target = $region3
    $region8: #{tpu_custom_call.1} parent=1 // loop_exit
      _
    %854 = vsyncpa [#allocation6], 1
    %s855 = scalar_lea.sflag [#allocation6], 1
    %856 = vsyncpa %s855, 1

</llo_original>
